<compile_context>
chip_gen: v7x
topology: tpu7x:2x2x1
jax: 0.10.0
libtpu: 0.0.40
codegen_flags: <defaults>
</compile_context>

<pallas_src>
import math
import numpy as np
import jax
import jax.numpy as jnp
from jax.experimental import pallas as pl
from jax.experimental.pallas import tpu as pltpu


_VMEM_LIMIT = 32 * 1024 * 1024     # safe scoped-VMEM request on v5e/v6e/v7x
_LANE = 128                        # TPU vreg lane width
_MAX_ROW_TILE = 512                # scorer row-tile cap (review: <=512 @ N~4k)
_MAX_LANE_TILE = 512               # edge/row/pool lane-tile cap


def _round_up(v, m):
    return ((v + m - 1) // m) * m


def _compiler_params():
    return pltpu.CompilerParams(dimension_semantics=("parallel",),
                                vmem_limit_bytes=_VMEM_LIMIT)


def _pick_scorer_tile(n):
    # keep each double-buffered bf16 adjacency tile <= ~4 MiB
    cap = max(16, ((4 * 1024 * 1024) // max(2 * n, 1)) // 16 * 16)
    return min(_MAX_ROW_TILE, cap, _round_up(n, 16))


def _pick_lane_tile(r):
    return min(_MAX_LANE_TILE, _round_up(max(r, 1), _LANE))


# ----------------------------------------------------------------------------
# 1) GCN scorer:  scores[i] = dinv[i] * sum_j A[i,j] * (dinv[j]*xw[j]) + b
#    (tiled over rows, VPU multiply + lane reduce, fused tanh)
# ----------------------------------------------------------------------------
def _score_kernel(adj_ref, v_ref, dinv_ref, b_ref, sc_ref, th_ref):
    a = adj_ref[...].astype(jnp.float32)                       # (TM, N) 0/1
    agg = jnp.sum(a * v_ref[...], axis=-1, keepdims=True)      # (TM, 1)
    s = agg * dinv_ref[...] + b_ref[...]
    sc_ref[...] = s
    th_ref[...] = jnp.tanh(s)                                  # fused non-lin.


def gcn_scores(adj_bf16, v_row, dinv_col, bias, *, tm):
    n_pad, n = adj_bf16.shape
    return pl.pallas_call(
        _score_kernel,
        out_shape=(jax.ShapeDtypeStruct((n_pad, 1), jnp.float32),
                   jax.ShapeDtypeStruct((n_pad, 1), jnp.float32)),
        grid=(n_pad // tm,),
        in_specs=[pl.BlockSpec((tm, n), lambda i: (i, 0)),
                  pl.BlockSpec((1, n), lambda i: (0, 0)),
                  pl.BlockSpec((tm, 1), lambda i: (i, 0)),
                  pl.BlockSpec((1, 1), lambda i: (0, 0))],
        out_specs=(pl.BlockSpec((tm, 1), lambda i: (i, 0)),
                   pl.BlockSpec((tm, 1), lambda i: (i, 0))),
        compiler_params=_compiler_params(),
    )(adj_bf16, v_row, dinv_col, bias)


# ----------------------------------------------------------------------------
# 2) Edge kernel (lane-dense, R on lanes): attention softmax, gaussian kernel,
#    per-row descending sort of gk with the softmaxed atts permuted alongside.
# ----------------------------------------------------------------------------
def _make_edge_kernel(fs):
    def kernel(xs_ref, xd_ref, a1_ref, a2_ref, gk_ref, gks_ref, sms_ref):
        xs = xs_ref[...]                                       # (C, RT)
        a1 = a1_ref[...]                                       # (C, 1)
        a2 = a2_ref[...]
        src_term = jnp.sum(xs * a1, axis=0, keepdims=True)     # (1, RT)

        sm_rows, gk_rows = [], []
        for j in range(fs):                                    # fs tiny, static
            xdj = xd_ref[j]                                    # (C, RT)
            sm_rows.append(src_term + jnp.sum(xdj * a2, axis=0, keepdims=True))
            # TODO(synk): sqrt has undefined grad at d=0 (forward-only here).
            d = jnp.sqrt(jnp.sum((xs - xdj) ** 2, axis=0, keepdims=True))
            gk_rows.append(jnp.exp(-0.5 * d) - 1e-5)

        sm = jnp.concatenate(sm_rows, axis=0)                  # (fs, RT)
        sm = sm - jnp.max(sm, axis=0, keepdims=True)
        e = jnp.exp(sm)
        smx = e / jnp.sum(e, axis=0, keepdims=True)            # scatter_softmax

        gk = jnp.concatenate(gk_rows, axis=0)                  # original order
        gk_ref[...] = gk

        # descending sort of gk over window positions (odd-even network),
        # permuting the softmaxed attention values alongside.
        keys = [gk[j:j + 1, :] for j in range(fs)]
        vals = [smx[j:j + 1, :] for j in range(fs)]
        for it in range(fs):
            for i in range(it % 2, fs - 1, 2):
                swap = keys[i] < keys[i + 1]
                keys[i], keys[i + 1] = (jnp.where(swap, keys[i + 1], keys[i]),
                                        jnp.where(swap, keys[i], keys[i + 1]))
                vals[i], vals[i + 1] = (jnp.where(swap, vals[i + 1], vals[i]),
                                        jnp.where(swap, vals[i], vals[i + 1]))
        gks_ref[...] = jnp.concatenate(keys, axis=0)
        sms_ref[...] = jnp.concatenate(vals, axis=0)
    return kernel


def edge_stage(xs_t, xd_t, a1, a2, *, rt):
    fs, c, r_pad = xd_t.shape
    return pl.pallas_call(
        _make_edge_kernel(fs),
        out_shape=tuple(jax.ShapeDtypeStruct((fs, r_pad), jnp.float32)
                        for _ in range(3)),
        grid=(r_pad // rt,),
        in_specs=[pl.BlockSpec((c, rt), lambda i: (0, i)),
                  pl.BlockSpec((fs, c, rt), lambda i: (0, 0, i)),
                  pl.BlockSpec((c, 1), lambda i: (0, 0)),
                  pl.BlockSpec((c, 1), lambda i: (0, 0))],
        out_specs=tuple(pl.BlockSpec((fs, rt), lambda i: (0, i))
                        for _ in range(3)),
        compiler_params=_compiler_params(),
    )(xs_t, xd_t, a1, a2)


# ----------------------------------------------------------------------------
# 3) Row kernel (lane-dense, R on lanes): gumbel-softmax / threshold / relu /
#    attention-weight normalisation / argmin over positions 1..fs-1.
# ----------------------------------------------------------------------------
def _make_row_kernel(tau0, fs):
    tau0 = float(tau0)

    def kernel(logit_ref, gum_ref, gks_ref, gko_ref, attw_ref, amin_ref):
        shape = logit_ref.shape                                # (fs, RT)
        pos = jax.lax.broadcasted_iota(jnp.int32, shape, 0)    # window position

        # logits_all[row start] = -inf (sorted position 0 == self edge)
        logits = jnp.where(pos == 0, jnp.float32(-1e30), logit_ref[...])
        z = (gum_ref[...] + logits) / jnp.float32(tau0)
        z = z - jnp.max(z, axis=0, keepdims=True)
        p = jnp.exp(z)
        gmb = p / jnp.sum(p, axis=0, keepdims=True)            # gumbel softmax

        ths = jnp.sum(gks_ref[...] * gmb, axis=0, keepdims=True)   # (1, RT)
        gko = gko_ref[...]
        shifted = jnp.maximum(gko - ths, 0.0)                  # relu(gk - ths)

        att_w = shifted / (1.0 - ths) + (1.0 + 1e-12)
        att_w = jnp.where(pos == 0, 1.0, att_w)                # one_places_bool
        att_w = att_w / jnp.sum(att_w, axis=0, keepdims=True)
        attw_ref[...] = att_w

        # scatter_min over positions 1..fs-1 (position 0 masked out)
        masked = jnp.where(pos == 0, jnp.float32(1e30), shifted)
        minval = jnp.min(masked, axis=0, keepdims=True)
        cand = jnp.where(masked == minval, pos, fs)
        amin_ref[...] = jnp.min(cand, axis=0, keepdims=True).astype(jnp.int32)

    return kernel


def row_stage(logits_t, gumbels_t, gks_t, gk_t, tau0, *, rt):
    fs, r_pad = logits_t.shape
    return pl.pallas_call(
        _make_row_kernel(tau0, fs),
        out_shape=(jax.ShapeDtypeStruct((fs, r_pad), jnp.float32),
                   jax.ShapeDtypeStruct((1, r_pad), jnp.int32)),
        grid=(r_pad // rt,),
        in_specs=[pl.BlockSpec((fs, rt), lambda i: (0, i))] * 4,
        out_specs=(pl.BlockSpec((fs, rt), lambda i: (0, i)),
                   pl.BlockSpec((1, rt), lambda i: (0, i))),
        compiler_params=_compiler_params(),
    )(logits_t, gumbels_t, gks_t, gk_t)


# ----------------------------------------------------------------------------
# 4) Sparse pool: new_x[:, p] = sum_j w[j, p] * x[dest[p, j], :]
#    (gather-weighted sum; replaces the dense S @ x matmul)
# ----------------------------------------------------------------------------
def _pool_kernel(w_ref, xg_ref, out_ref):
    fs = w_ref.shape[0]
    acc = w_ref[0:1, :] * xg_ref[0]                           # (C, PT)
    for j in range(1, fs):
        acc = acc + w_ref[j:j + 1, :] * xg_ref[j]
    out_ref[...] = acc


def pool_stage(w_t, xg_t, *, pt):
    fs, c, p_pad = xg_t.shape
    return pl.pallas_call(
        _pool_kernel,
        out_shape=jax.ShapeDtypeStruct((c, p_pad), jnp.float32),
        grid=(p_pad // pt,),
        in_specs=[pl.BlockSpec((fs, pt), lambda i: (0, i)),
                  pl.BlockSpec((fs, c, pt), lambda i: (0, 0, i))],
        out_specs=pl.BlockSpec((c, pt), lambda i: (0, i)),
        compiler_params=_compiler_params(),
    )(w_t, xg_t)


# ----------------------------------------------------------------------------
# Host-side graph glue (data dependent, concrete values)
# ----------------------------------------------------------------------------
def topk_per_graph(scores, ratio, batch):
    perm = []
    for g in np.unique(batch):
        idx = np.where(batch == g)[0]
        k = int(math.ceil(ratio * idx.size))
        order = np.argsort(-scores[idx], kind="stable")
        perm.append(idx[order[:k]])
    return np.concatenate(perm).astype(np.int64)


def filter_adj(edge_index, edge_attr, perm, num_nodes):
    relabel = np.full(num_nodes, -1, np.int64)
    relabel[perm] = np.arange(len(perm))
    src, dst = edge_index[0], edge_index[1]
    keep = (relabel[src] >= 0) & (relabel[dst] >= 0)
    new_ei = np.stack([relabel[src[keep]], relabel[dst[keep]]]).astype(np.int32)
    new_ea = edge_attr[keep] if edge_attr is not None else None
    return new_ei, new_ea


# ----------------------------------------------------------------------------
# SKipPool_Full (scorer='sag', non_linearity=tanh, aggr_type='agg_scale')
# ----------------------------------------------------------------------------
class SKipPoolFullPallas:
    def __init__(self, in_channels, init_ratio, last_ratio, tot_epochs,
                 tauA=10, tauB=0.1, min_num_c=8, fixStride=None, seed=0):
        self.in_channels = in_channels
        self.init_ratio = 1.0 if init_ratio >= 0.999 else init_ratio
        self.last_ratio = last_ratio
        self.tot_epochs = tot_epochs
        self.tauA, self.tauB = tauA, tauB
        self.min_num_c = min_num_c
        self.fs_ratio = 1.0 / min_num_c
        self.fixStride = fixStride
        self.seed = seed
        self.eps = 1e-20
        self._calls = 0

        key = jax.random.PRNGKey(42)
        k1, k2, k3 = jax.random.split(key, 3)
        c = in_channels
        # SAGPool scorer = GCNConv(in_channels, 1): weight (C,1), bias (1,1)
        self.w_score = (jax.random.normal(k1, (c, 1), jnp.float32)
                        / jnp.sqrt(jnp.float32(c)))
        self.b_score = jnp.full((1, 1), 0.1, jnp.float32)
        # att_params: Parameter(randn(2C, 1))
        self.att_params = jax.random.normal(k2, (2 * c, 1), jnp.float32)
        # sim_transform Linear(C, C): declared but unused in the reference fwd
        std = math.sqrt(2.0 / (c + c))
        self.sim_transform_w = jax.random.normal(k3, (c, c), jnp.float32) * std

    def forward(self, x, edge_index, epoch, edge_attr=None, batch=None):
        assert self.fixStride is not None and self.fixStride >= 2
        fs = int(self.fixStride)
        x = jnp.asarray(x, jnp.float32)
        n0, c = int(x.shape[0]), int(x.shape[1])
        edge_index = np.asarray(edge_index)
        if batch is None:
            batch = np.zeros(n0, np.int64)
        batch = np.asarray(batch, np.int64)
        tau0 = self.tauA * (self.tauB / self.tauA) ** (epoch / self.tot_epochs)

        # ---- SAGPool scorer: tiled GCN score kernel (fused tanh) ------------
        tm = _pick_scorer_tile(n0)
        n_pad = _round_up(n0, tm)
        src = jnp.asarray(edge_index[0])
        dst = jnp.asarray(edge_index[1])
        adj = jnp.zeros((n_pad, n0), jnp.float32)
        adj = adj.at[dst, src].set(1.0)                      # message src -> dst
        diag = jnp.arange(n0)
        adj = adj.at[diag, diag].set(1.0)                    # self loops
        deg = jnp.sum(adj[:n0], axis=1)
        dinv = jax.lax.rsqrt(jnp.maximum(deg, 1e-12))
        xw = (x @ self.w_score)[:, 0]                        # tiny projection
        v_row = (dinv * xw).reshape(1, n0)
        dinv_col = jnp.pad(dinv[:, None], ((0, n_pad - n0), (0, 0)))
        # 0/1 adjacency is exact in bf16 -> halves HBM traffic, same numerics.
        adj_bf = adj.astype(jnp.bfloat16)
        # TODO(synk): for large sparse graphs, replace this O(N^2) dense
        # aggregation with an edge-list segment-sum (O(E)) path.
        scores_raw, scores_tanh = gcn_scores(adj_bf, v_row, dinv_col,
                                             self.b_score, tm=tm)
        scores = scores_raw[:n0, 0]
        scores_t = scores_tanh[:n0, 0]

        scores_np = np.asarray(jax.device_get(scores))
        perm = topk_per_graph(scores_np, self.init_ratio, batch)
        perm_dev = jnp.asarray(perm)
        x_p = x[perm_dev]
        batch_p = batch[perm]
        ei_p, ea_p = filter_adj(edge_index, edge_attr, perm, n0)
        scores_ranked = scores_t[perm_dev].reshape(-1, 1)

        np_nodes = int(x_p.shape[0])
        batch_size = np.bincount(batch_p, minlength=int(batch_p.max()) + 1)
        batch_cumsum = np.concatenate([[0], np.cumsum(batch_size)])
        skipping_g_inx = np.where(batch_size >= fs)[0]
        assert len(skipping_g_inx) > 0, "no graph has >= fixStride nodes"

        # ---- window (skip-stride) index construction (host, data dependent) -
        dests_all, srcs_first, rows_per_graph, row_graph_ids = [], [], [], []
        for gi_local, inx in enumerate(skipping_g_inx):
            col_size = int(batch_size[inx])
            bsc = int(batch_cumsum[inx])
            res = col_size - fs + 1
            dests = np.arange(res)[:, None] + np.arange(fs)[None, :]
            dests_all.append(dests + bsc)
            srcs_first.append(np.arange(res) + bsc)
            rows_per_graph.append(res)
            row_graph_ids.append(np.full(res, gi_local, np.int32))
        dests_all = np.concatenate(dests_all, 0).astype(np.int32)   # (R, fs)
        srcs_first = np.concatenate(srcs_first).astype(np.int32)    # (R,)
        row_graph_ids = np.concatenate(row_graph_ids)
        new_rowwise_cumsum = np.concatenate([[0], np.cumsum(rows_per_graph)])
        r_rows = int(dests_all.shape[0])

        # ---- fused edge kernel: att softmax + gaussian kernel + sort --------
        rt = _pick_lane_tile(r_rows)
        r_pad = _round_up(r_rows, rt)
        dests_pad = np.zeros((r_pad, fs), np.int32)
        dests_pad[:r_rows] = dests_all
        srcs_pad = np.zeros((r_pad,), np.int32)
        srcs_pad[:r_rows] = srcs_first

        xd_t = jnp.transpose(x_p[jnp.asarray(dests_pad)], (1, 2, 0))  # (fs,C,Rp)
        xs_t = x_p[jnp.asarray(srcs_pad)].T                           # (C, Rp)
        a1 = self.att_params[:c].reshape(c, 1)
        a2 = self.att_params[c:].reshape(c, 1)
        gk_t, gks_t, smss_t = edge_stage(xs_t, xd_t, a1, a2, rt=rt)

        # per-graph column sums of the sorted softmax atts (tiny, plain JAX)
        rg = jnp.asarray(row_graph_ids)
        logits_graph = jax.ops.segment_sum(smss_t[:, :r_rows].T, rg,
                                           num_segments=len(skipping_g_inx))
        logits_rows_t = logits_graph[rg].T                            # (fs, R)
        logits_pad = jnp.pad(logits_rows_t, ((0, 0), (0, r_pad - r_rows)))

        # TODO(synk): torch's `-empty.random_().log()` noise is not reproduced
        # bit-exactly; standard Gumbel(0,1) noise is used instead.
        seed_val = int(self.seed) if self.seed is not None else self._calls
        self._calls += 1
        gumbels_t = jax.random.gumbel(jax.random.PRNGKey(seed_val),
                                      (fs, r_pad), jnp.float32)

        # ---- fused row kernel: gumbel-softmax / threshold / att-w / argmin --
        att_w_t, argmin_t = row_stage(logits_pad, gumbels_t, gks_t, gk_t,
                                      tau0, rt=rt)

        # ---- sequential pivot walk (data dependent, host side) --------------
        argmin_np = np.asarray(jax.device_get(argmin_t))[0, :r_rows]
        rows_argmin_added = np.arange(r_rows) + argmin_np
        pivots, pivots_in_x = [], []
        for i, gi in enumerate(skipping_g_inx):
            rows_start = int(new_rowwise_cumsum[i])
            rows_end = int(new_rowwise_cumsum[i + 1])
            start_res = int(batch_cumsum[gi]) - rows_start
            p = rows_start
            while p < rows_end:
                pivots.append(p)
                pivots_in_x.append(p + start_res)
                p = int(rows_argmin_added[p])
        pivots = np.asarray(pivots, np.int32)
        pivots_in_x = np.asarray(pivots_in_x, np.int32)
        num_pivots = int(pivots.size)

        # ---- sparse pool: gather-weighted-sum (no dense S through the MXU) --
        piv_dev = jnp.asarray(pivots)
        new_scores = scores_ranked[jnp.asarray(pivots_in_x)]          # (P, 1)
        w_valid = att_w_t[:, piv_dev] * new_scores[:, 0][None, :]     # (fs, P)

        pt = _pick_lane_tile(num_pivots)
        p_pad = _round_up(num_pivots, pt)
        piv_pad = np.zeros((p_pad,), np.int32)
        piv_pad[:num_pivots] = pivots
        xg_t = xd_t[:, :, jnp.asarray(piv_pad)]                       # (fs,C,Pp)
        w_t = jnp.pad(w_valid, ((0, 0), (0, p_pad - num_pivots)))
        new_x = pool_stage(w_t, xg_t, pt=pt)[:, :num_pivots].T        # (P, C)

        # ---- assignment matrix S only assembled for the returned s ----------
        s_att = att_w_t[:, piv_dev].T                                 # (P, fs)
        s_dests = jnp.asarray(dests_all[pivots])                      # (P, fs)
        s_mat = jnp.zeros((num_pivots, np_nodes), jnp.float32)
        s_mat = s_mat.at[jnp.arange(num_pivots)[:, None], s_dests].set(s_att)
        s_mat = s_mat * new_scores
        s_out = s_mat[:, jnp.asarray(np.argsort(perm))].T             # (Np, P)

        new_batch = batch_p[pivots_in_x]
        new_ei, new_ea = filter_adj(ei_p, ea_p, pivots_in_x, np_nodes)
        return new_x, new_ei, new_ea, new_batch, s_out


# ----------------------------------------------------------------------------
if __name__ == "__main__":
    key = jax.random.PRNGKey(0)
    C = 8
    nodes_per_graph = 12
    G = 2
    N0 = nodes_per_graph * G

    x = jax.random.normal(key, (N0, C), jnp.float32)

    # undirected path graph per sub-graph
    src, dst = [], []
    for g in range(G):
        off = g * nodes_per_graph
        for i in range(nodes_per_graph - 1):
            src += [off + i, off + i + 1]
            dst += [off + i + 1, off + i]
    edge_index = np.asarray([src, dst], np.int32)
    batch = np.repeat(np.arange(G), nodes_per_graph)

    model = SKipPoolFullPallas(in_channels=C, init_ratio=0.75, last_ratio=0.25,
                               tot_epochs=100, tauA=10, tauB=0.1,
                               min_num_c=8, fixStride=4, seed=0)

    new_x, new_ei, new_ea, new_batch, s = model.forward(
        x, edge_index, epoch=10, batch=batch)

    jax.block_until_ready(new_x)
    jax.block_until_ready(s)
    assert new_x.shape[1] == C and s.shape[1] == new_x.shape[0]
    assert np.all(np.isfinite(np.asarray(new_x)))
    print("KERNEL_OK")
</pallas_src>

<mosaic_0001>
module attributes {stable_mosaic.version = 11 : i64} {
  func.func @_score_kernel(%arg0: i32, %arg1: memref<32x24xbf16, #tpu.memory_space<vmem>>, %arg2: memref<1x24xf32, #tpu.memory_space<vmem>>, %arg3: memref<32x1xf32, #tpu.memory_space<vmem>>, %arg4: memref<1x1xf32, #tpu.memory_space<vmem>>, %arg5: memref<32x1xf32, #tpu.memory_space<vmem>>, %arg6: memref<32x1xf32, #tpu.memory_space<vmem>>) attributes {dimension_semantics = [#tpu.dimension_semantics<parallel>], iteration_bounds = array<i64: 1>, scalar_prefetch = 0 : i64, scratch_operands = 0 : i64, tpu.core_type = #tpu.core_type<tc>, window_params = [{transform_indices = @transform_0, window_bounds = array<i64: 32, 24>}, {pipeline_mode = #tpu.pipeline_mode<synchronous>, transform_indices = @transform_1, window_bounds = array<i64: 1, 24>}, {transform_indices = @transform_2, window_bounds = array<i64: 32, 1>}, {pipeline_mode = #tpu.pipeline_mode<synchronous>, transform_indices = @transform_3, window_bounds = array<i64: 1, 1>}, {transform_indices = @transform_4, window_bounds = array<i64: 32, 1>}, {transform_indices = @transform_5, window_bounds = array<i64: 32, 1>}]} {
    %c0 = arith.constant 0 : index
    %c0_0 = arith.constant 0 : index
    %0 = vector.load %arg1[%c0, %c0_0] : memref<32x24xbf16, #tpu.memory_space<vmem>>, vector<32x24xbf16>
    %1 = arith.extf %0 : vector<32x24xbf16> to vector<32x24xf32>
    %c0_1 = arith.constant 0 : index
    %c0_2 = arith.constant 0 : index
    %2 = vector.load %arg2[%c0_1, %c0_2] : memref<1x24xf32, #tpu.memory_space<vmem>>, vector<1x24xf32>
    %3 = vector.broadcast %2 : vector<1x24xf32> to vector<32x24xf32>
    %4 = arith.mulf %1, %3 : vector<32x24xf32>
    %cst = arith.constant dense<0.000000e+00> : vector<32xf32>
    %5 = vector.multi_reduction <add>, %4, %cst [1] : vector<32x24xf32> to vector<32xf32>
    %6 = vector.shape_cast %5 : vector<32xf32> to vector<32x1xf32>
    %c0_3 = arith.constant 0 : index
    %c0_4 = arith.constant 0 : index
    %7 = vector.load %arg3[%c0_3, %c0_4] : memref<32x1xf32, #tpu.memory_space<vmem>>, vector<32x1xf32>
    %8 = arith.mulf %6, %7 : vector<32x1xf32>
    %c0_5 = arith.constant 0 : index
    %c0_6 = arith.constant 0 : index
    %9 = vector.load %arg4[%c0_5, %c0_6] : memref<1x1xf32, #tpu.memory_space<vmem>>, vector<1x1xf32>
    %10 = vector.broadcast %9 : vector<1x1xf32> to vector<32x1xf32>
    %11 = arith.addf %8, %10 : vector<32x1xf32>
    %c0_7 = arith.constant 0 : index
    %c0_8 = arith.constant 0 : index
    %12 = vector.load %arg5[%c0_7, %c0_8] : memref<32x1xf32, #tpu.memory_space<vmem>>, vector<32x1xf32>
    tpu.vector_store %arg5[%c0_7, %c0_8], %11 {strides = array<i32>} : memref<32x1xf32, #tpu.memory_space<vmem>>, vector<32x1xf32>,
    %13 = math.tanh %11 : vector<32x1xf32>
    %c0_9 = arith.constant 0 : index
    %c0_10 = arith.constant 0 : index
    %14 = vector.load %arg6[%c0_9, %c0_10] : memref<32x1xf32, #tpu.memory_space<vmem>>, vector<32x1xf32>
    tpu.vector_store %arg6[%c0_9, %c0_10], %13 {strides = array<i32>} : memref<32x1xf32, #tpu.memory_space<vmem>>, vector<32x1xf32>,
    return
  }
  func.func @transform_0(%arg0: i32) -> (i32, i32) {
    %c0_i32 = arith.constant 0 : i32
    %c0_i32_0 = arith.constant 0 : i32
    return %arg0, %c0_i32 : i32, i32
  }
  func.func @transform_1(%arg0: i32) -> (i32, i32) {
    %c0_i32 = arith.constant 0 : i32
    %c0_i32_0 = arith.constant 0 : i32
    %c0_i32_1 = arith.constant 0 : i32
    return %c0_i32, %c0_i32_0 : i32, i32
  }
  func.func @transform_2(%arg0: i32) -> (i32, i32) {
    %c0_i32 = arith.constant 0 : i32
    %c0_i32_0 = arith.constant 0 : i32
    return %arg0, %c0_i32 : i32, i32
  }
  func.func @transform_3(%arg0: i32) -> (i32, i32) {
    %c0_i32 = arith.constant 0 : i32
    %c0_i32_0 = arith.constant 0 : i32
    %c0_i32_1 = arith.constant 0 : i32
    return %c0_i32, %c0_i32_0 : i32, i32
  }
  func.func @transform_4(%arg0: i32) -> (i32, i32) {
    %c0_i32 = arith.constant 0 : i32
    %c0_i32_0 = arith.constant 0 : i32
    return %arg0, %c0_i32 : i32, i32
  }
  func.func @transform_5(%arg0: i32) -> (i32, i32) {
    %c0_i32 = arith.constant 0 : i32
    %c0_i32_0 = arith.constant 0 : i32
    return %arg0, %c0_i32 : i32, i32
  }
}

</mosaic_0001>

<llo_original>
// kernel: tpu_custom_call.1
$region0: #{tpu_custom_call.1}
  #allocation0 [shape = 'u32[]', space=smem, size = 0x4, offset = 0x4, fixed_abs, tag = 'smem constant byte address 0x4 - core index']
  #allocation1 [shape = 'u32[144,128]{1,0:T(1,128)}', space=vmem, size = 0x12000, scoped, tag = 'internal scratch']
  #allocation2 [shape = 'f32[1,1]{1,0:T(1,128)S(1)}', space=vmem, size = 0x200, scoped, tag = 'scoped memory for tpu_custom_call.1']
  %s0 = inlined_call_operand.vmem [shape: bf16[32,24], index: 0, kind: input, shape index: {}]
  %s1 = inlined_call_operand.vmem [shape: f32[1,24], index: 1, kind: input, shape index: {}]
  %s2 = inlined_call_operand.vmem [shape: f32[32,1], index: 2, kind: input, shape index: {}]
  %s3 = inlined_call_operand.<no memory space> [shape: f32[1,1], index: 3, kind: input, shape index: {}]
  %s4 = inlined_call_operand.vmem [shape: f32[32,1], index: 4, kind: output, shape index: {0}]
  %s5 = inlined_call_operand.vmem [shape: f32[32,1], index: 5, kind: output, shape index: {1}]
  %6 = xla_tuple %s4, %s5
  %s7 = sld [smem:[#allocation0]]
  $region34: #{tpu_custom_call.1} parent=0
    _
  %s9 = ssub.s32 1, %s7
  %s10 = scalar_select 0, %s9, %s7
  %v11 = vstv %s3
  %12 = vst [vmem:[#allocation2] sm:$0x1] %v11
  // Predicated region
  $region2: #{tpu_custom_call.1} parent=0 // pred_check
    _
  $region3: #{tpu_custom_call.1} parent=0 // pred_check_branch
    %14 = sbr.rel (0) target = $region5
  $region4: #{tpu_custom_call.1} parent=0 // pred_region
    _
  $region5: #{tpu_custom_call.1} parent=0 // pred_fallthru
    _
  // Predicated region
  $region6: #{tpu_custom_call.1} parent=0 // pred_check
    _
  $region7: #{tpu_custom_call.1} parent=0 // pred_check_branch
    %16 = sbr.rel (0) target = $region9
  $region8: #{tpu_custom_call.1} parent=0 // pred_region
    _
  $region9: #{tpu_custom_call.1} parent=0 // pred_fallthru
    _
  // Predicated region
  $region10: #{tpu_custom_call.1} parent=0 // pred_check
    _
  $region11: #{tpu_custom_call.1} parent=0 // pred_check_branch
    %18 = sbr.rel (0) target = $region13
  $region12: #{tpu_custom_call.1} parent=0 // pred_region
    _
  $region13: #{tpu_custom_call.1} parent=0 // pred_fallthru
    _
  // Predicated region
  $region14: #{tpu_custom_call.1} parent=0 // pred_check
    _
  $region15: #{tpu_custom_call.1} parent=0 // pred_check_branch
    %20 = sbr.rel (0) target = $region17
  $region16: #{tpu_custom_call.1} parent=0 // pred_region
    _
  $region17: #{tpu_custom_call.1} parent=0 // pred_fallthru
    _
  %v21 = vld [vmem:[%s0] sm:$0xf]
  %v22 = vld [vmem:[%s0 + $0x4] sm:$0xf]
  %v23 = vld [vmem:[%s0 + $0x8] sm:$0xf]
  %v24 = vld [vmem:[%s0 + $0xc] sm:$0xf]
  %v25 = vunpack.c.l.bf16 %v21
  %v26 = vunpack.c.l.bf16 %v22
  %v27 = vunpack.c.l.bf16 %v23
  %v28 = vunpack.c.l.bf16 %v24
  %v29 = vld [vmem:[%s1] sm:$0x1]
  %v31 = vlaneseq
  %v32 = vshrl.u32 %v31, 7
  %v33 = vsub.s32 0, %v32
  %v34 = vrot.slane %v29, %v33
  %v36 = vmul.f32 %v25, %v34
  %v37 = vmul.f32 %v26, %v34
  %v38 = vmul.f32 %v27, %v34
  %v39 = vmul.f32 %v28, %v34
  %vm40 = vcmask 195584
  %v41 = vsel %vm40, %v36, 0.0
  %42 = vadd.xlane.f32.xlu0 %v41
  %v43 = vpop.xlane.xlu0 %42
  %v44 = vsel %vm40, %v37, 0.0
  %45 = vadd.xlane.f32.xlu0 %v44
  %v46 = vpop.xlane.xlu0 %45
  %v47 = vsel %vm40, %v38, 0.0
  %48 = vadd.xlane.f32.xlu0 %v47
  %v49 = vpop.xlane.xlu0 %48
  %v50 = vsel %vm40, %v39, 0.0
  %51 = vadd.xlane.f32.xlu0 %v50
  %v52 = vpop.xlane.xlu0 %51
  %v53 = vld [vmem:[%s2] sm:$0xff]
  %v54 = vld [vmem:[%s2 + $0x8] sm:$0xff]
  %v55 = vld [vmem:[%s2 + $0x10] sm:$0xff]
  %v56 = vld [vmem:[%s2 + $0x18] sm:$0xff]
  %v57 = vmul.f32 %v43, %v53
  %v58 = vmul.f32 %v46, %v54
  %v59 = vmul.f32 %v49, %v55
  %v60 = vmul.f32 %v52, %v56
  %v61 = vld [vmem:[#allocation2] sm:$0x1]
  %v63 = vlaneseq
  %v64 = vshrl.u32 %v63, 7
  %v65 = vsub.s32 0, %v64
  %v66 = vrot.slane %v61, %v65
  %v68 = vadd.f32 %v57, %v66
  %v69 = vadd.f32 %v58, %v66
  %v70 = vadd.f32 %v59, %v66
  %v71 = vadd.f32 %v60, %v66
  %vm72 = vcmask 7168
  %73 = vst.msk [vmem:[%s4] sm:$0xff] %vm72, %v68
  %74 = vst.msk [vmem:[%s4 + $0x8] sm:$0xff] %vm72, %v69
  %75 = vst.msk [vmem:[%s4 + $0x10] sm:$0xff] %vm72, %v70
  %76 = vst.msk [vmem:[%s4 + $0x18] sm:$0xff] %vm72, %v71
  %v77 = vtanh.pop %v68
  %v78 = vtanh.pop %v69
  %v79 = vtanh.pop %v70
  %v80 = vtanh.pop %v71
  %81 = vst.msk [vmem:[%s5] sm:$0xff] %vm72, %v77
  %82 = vst.msk [vmem:[%s5 + $0x8] sm:$0xff] %vm72, %v78
  %83 = vst.msk [vmem:[%s5 + $0x10] sm:$0xff] %vm72, %v79
  %84 = vst.msk [vmem:[%s5 + $0x18] sm:$0xff] %vm72, %v80
  // Predicated region
  $region18: #{tpu_custom_call.1} parent=0 // pred_check
    _
  $region19: #{tpu_custom_call.1} parent=0 // pred_check_branch
    %86 = sbr.rel (0) target = $region21
  $region20: #{tpu_custom_call.1} parent=0 // pred_region
    _
  $region21: #{tpu_custom_call.1} parent=0 // pred_fallthru
    _
  // Predicated region
  $region22: #{tpu_custom_call.1} parent=0 // pred_check
    _
  $region23: #{tpu_custom_call.1} parent=0 // pred_check_branch
    %88 = sbr.rel (0) target = $region25
  $region24: #{tpu_custom_call.1} parent=0 // pred_region
    _
  $region25: #{tpu_custom_call.1} parent=0 // pred_fallthru
    _
  // Predicated region
  $region26: #{tpu_custom_call.1} parent=0 // pred_check
    _
  $region27: #{tpu_custom_call.1} parent=0 // pred_check_branch
    %90 = sbr.rel (0) target = $region29
  $region28: #{tpu_custom_call.1} parent=0 // pred_region
    _
  $region29: #{tpu_custom_call.1} parent=0 // pred_fallthru
    _
  // Predicated region
  $region30: #{tpu_custom_call.1} parent=0 // pred_check
    _
  $region31: #{tpu_custom_call.1} parent=0 // pred_check_branch
    %92 = sbr.rel (0) target = $region33
  $region32: #{tpu_custom_call.1} parent=0 // pred_region
    _
  $region33: #{tpu_custom_call.1} parent=0 // pred_fallthru
    _

</llo_original>
